<compile_context>
chip_gen: v7x
topology: tpu7x:2x2x1
jax: 0.10.0
libtpu: 0.0.40
codegen_flags: <defaults>
</compile_context>

<pallas_src>
import functools

import numpy as np
import jax
import jax.numpy as jnp
from jax import lax
from jax.experimental import pallas as pl
from jax.experimental.pallas import tpu as pltpu

HIDDEN_DIM = 64
IMF_NUMS = 2                      # exp_itme = 'our_2'
INPUT_DIM = IMF_NUMS + 2          # 4
IN_F = INPUT_DIM - 1              # 3   (fc1 in_features)
OUT_F = INPUT_DIM - 1             # 3   (fc2 out_features)
BN_EPS = 1e-5


def drnet_kernel(x_ref, p1_ref, p2_ref, recon_ref, weights_ref, *, K):
    x = x_ref[...]                                             # (B, IN_F) f32

    # ---- unpack packed parameter slabs (static value slices, no extra DMAs) ----
    p1 = p1_ref[...]                                           # (IN_F+2, H)
    w1 = p1[0:IN_F, :]                                         # (IN_F, H)
    gamma = p1[IN_F:IN_F + 1, :]                               # (1, H)
    beta = p1[IN_F + 1:IN_F + 2, :]                            # (1, H)
    p2 = p2_ref[...]                                           # (H+1, OUT_F)
    w2 = p2[0:HIDDEN_DIM, :]                                   # (H, OUT_F)
    b2 = p2[HIDDEN_DIM:HIDDEN_DIM + 1, :]                      # (1, OUT_F)

    # ---- fc1 (MXU). b1 omitted: cancelled exactly by the batch-mean subtract. ----
    h = jnp.dot(x, w1, preferred_element_type=jnp.float32)

    # ---- BatchNorm1d, training mode: batch mean / biased batch variance ----
    mean = jnp.mean(h, axis=0, keepdims=True)                  # (1, H)
    var = jnp.mean(jnp.square(h - mean), axis=0, keepdims=True)
    h = (h - mean) * lax.rsqrt(var + BN_EPS)
    h = h * gamma + beta

    # ---- ReLU ----
    h = jnp.maximum(h, 0.0)

    # ---- fc2 (MXU) ----
    w = jnp.dot(h, w2, preferred_element_type=jnp.float32) + b2
    B, F = w.shape                                             # (B, OUT_F)

    # ---- last column -> sigmoid ; first F-1 columns -> softmax * K ----
    col = lax.broadcasted_iota(jnp.int32, (B, F), 1)
    soft_mask = col < (F - 1)
    masked_logits = jnp.where(soft_mask, w, -jnp.inf)
    m = jnp.max(masked_logits, axis=1, keepdims=True)
    e = jnp.exp(masked_logits - m)            # masked cols: exp(-inf) == 0
    # exact reciprocals (approx=True would cost ~1e-3 rel. error vs reference)
    soft = e * pl.reciprocal(jnp.sum(e, axis=1, keepdims=True), approx=False)
    sig = pl.reciprocal(1.0 + jnp.exp(-w), approx=False)       # sigmoid(w)
    weights = jnp.where(soft_mask, soft * K, sig)              # K is a constant
    weights_ref[...] = weights

    # ---- reconstructed signal ----
    # ws[:, c] = weights[:, c+1] for c < F-1 ; ws[:, F-1] = weights[:, F-1]
    # (static lane shift + concat instead of a weights @ P matmul)
    ws = jnp.concatenate([weights[:, 1:], weights[:, F - 1:F]], axis=1)  # (B, F)
    # recon[i, j] = sum_c x[i, c] * ws[j, c]  == the torch (B,)*(B,1) broadcast
    recon_ref[...] = lax.dot_general(x, ws, (((1,), (1,)), ((), ())),
                                     preferred_element_type=jnp.float32)  # (B, B)


def drnet_forward(imfs, error, K, params):
    # glue: concatenate (B,1) inputs; pack the six parameter arrays into 2 slabs
    x = jnp.concatenate(list(imfs) + [error], axis=1).astype(jnp.float32)  # (B, IN_F)
    B = x.shape[0]
    F = params["w2"].shape[1]

    slab1 = jnp.concatenate(
        [params["w1"], params["gamma"], params["beta"]], axis=0
    ).astype(jnp.float32)                                      # (IN_F+2, H)
    slab2 = jnp.concatenate(
        [params["w2"], params["b2"]], axis=0
    ).astype(jnp.float32)                                      # (H+1, OUT_F)

    vmem = pl.BlockSpec(memory_space=pltpu.MemorySpace.VMEM)
    recon, weights = pl.pallas_call(
        functools.partial(drnet_kernel, K=float(K)),
        out_shape=(jax.ShapeDtypeStruct((B, B), jnp.float32),
                   jax.ShapeDtypeStruct((B, F), jnp.float32)),
        in_specs=[vmem, vmem, vmem],
        out_specs=(vmem, vmem),
    )(x, slab1, slab2)
    return recon, weights


def drnet_reference(imfs, error, K, params):
    """Pure-JAX literal transcription of the PyTorch forward (for checking).
    Keeps b1 so the kernel's b1-cancellation is verified by the test."""
    x = jnp.concatenate(list(imfs) + [error], axis=1)
    h = x @ params["w1"] + params["b1"]
    mean = h.mean(axis=0, keepdims=True)
    var = ((h - mean) ** 2).mean(axis=0, keepdims=True)
    h = (h - mean) / jnp.sqrt(var + BN_EPS) * params["gamma"] + params["beta"]
    h = jnp.maximum(h, 0.0)
    w = h @ params["w2"] + params["b2"]
    w_last = jax.nn.sigmoid(w[:, -1:])
    others = jax.nn.softmax(w[:, :-1], axis=1) * K
    weights = jnp.concatenate([others, w_last], axis=1)
    recon = 0.0
    for i, imf in enumerate(imfs):
        recon = recon + weights[:, i + 1] * imf       # (B,)*(B,1) -> (B,B)
    recon = recon + weights[:, -1] * error
    return recon, weights


def init_params(key):
    k1, k2, k3, k4 = jax.random.split(key, 4)
    lim1 = 1.0 / np.sqrt(IN_F)
    lim2 = 1.0 / np.sqrt(HIDDEN_DIM)
    return {
        # fc1 / fc2 weights stored transposed vs PyTorch: (in, out)
        "w1": jax.random.uniform(k1, (IN_F, HIDDEN_DIM), jnp.float32, -lim1, lim1),
        "b1": jax.random.uniform(k2, (1, HIDDEN_DIM), jnp.float32, -lim1, lim1),
        "w2": jax.random.uniform(k3, (HIDDEN_DIM, OUT_F), jnp.float32, -lim2, lim2),
        "b2": jax.random.uniform(k4, (1, OUT_F), jnp.float32, -lim2, lim2),
        "gamma": jnp.ones((1, HIDDEN_DIM), jnp.float32),   # BN default init
        "beta": jnp.zeros((1, HIDDEN_DIM), jnp.float32),
    }


if __name__ == "__main__":
    key = jax.random.PRNGKey(0)
    pkey, dkey = jax.random.split(key)
    params = init_params(pkey)

    B = 8
    d1, d2, d3 = jax.random.split(dkey, 3)
    imfs = [jax.random.normal(d1, (B, 1), jnp.float32),
            jax.random.normal(d2, (B, 1), jnp.float32)]
    error = jax.random.normal(d3, (B, 1), jnp.float32)
    K = 1.7

    recon, weights = drnet_forward(imfs, error, K, params)
    recon = jax.block_until_ready(recon)
    weights = jax.block_until_ready(weights)

    recon_ref, weights_ref = drnet_reference(imfs, error, K, params)

    assert recon.shape == (B, B) and weights.shape == (B, OUT_F)
    assert np.allclose(np.asarray(weights), np.asarray(weights_ref),
                       rtol=1e-5, atol=1e-5)
    assert np.allclose(np.asarray(recon), np.asarray(recon_ref),
                       rtol=1e-5, atol=1e-5)

    print("KERNEL_OK")
</pallas_src>

<mosaic_0001>
module attributes {stable_mosaic.version = 11 : i64} {
  func.func @drnet_kernel(%arg0: memref<8x3xf32, #tpu.memory_space<vmem>>, %arg1: memref<5x64xf32, #tpu.memory_space<vmem>>, %arg2: memref<65x3xf32, #tpu.memory_space<vmem>>, %arg3: memref<8x8xf32, #tpu.memory_space<vmem>>, %arg4: memref<8x3xf32, #tpu.memory_space<vmem>>) attributes {dimension_semantics = [], scalar_prefetch = 0 : i64, scratch_operands = 0 : i64, tpu.core_type = #tpu.core_type<tc>} {
    %c0 = arith.constant 0 : index
    %c0_0 = arith.constant 0 : index
    %0 = vector.load %arg0[%c0, %c0_0] : memref<8x3xf32, #tpu.memory_space<vmem>>, vector<8x3xf32>
    %c0_1 = arith.constant 0 : index
    %c0_2 = arith.constant 0 : index
    %1 = vector.load %arg1[%c0_1, %c0_2] : memref<5x64xf32, #tpu.memory_space<vmem>>, vector<5x64xf32>
    %2 = vector.extract_strided_slice %1 {offsets = [0, 0], sizes = [3, 64], strides = [1, 1]} : vector<5x64xf32> to vector<3x64xf32>
    %3 = vector.extract_strided_slice %1 {offsets = [3, 0], sizes = [1, 64], strides = [1, 1]} : vector<5x64xf32> to vector<1x64xf32>
    %4 = vector.extract_strided_slice %1 {offsets = [4, 0], sizes = [1, 64], strides = [1, 1]} : vector<5x64xf32> to vector<1x64xf32>
    %c0_3 = arith.constant 0 : index
    %c0_4 = arith.constant 0 : index
    %5 = vector.load %arg2[%c0_3, %c0_4] : memref<65x3xf32, #tpu.memory_space<vmem>>, vector<65x3xf32>
    %6 = vector.extract_strided_slice %5 {offsets = [0, 0], sizes = [64, 3], strides = [1, 1]} : vector<65x3xf32> to vector<64x3xf32>
    %7 = vector.extract_strided_slice %5 {offsets = [64, 0], sizes = [1, 3], strides = [1, 1]} : vector<65x3xf32> to vector<1x3xf32>
    %cst = arith.constant dense<0.000000e+00> : vector<8x64xf32>
    %8 = tpu.matmul %0, %2, %cst {dimension_numbers = #tpu.dot_dimension_numbers<[1], [0], [0], [1], [0, 0, 1, 1], [], []>} : vector<8x3xf32>, vector<3x64xf32>, vector<8x64xf32> -> vector<8x64xf32>
    %cst_5 = arith.constant dense<0.000000e+00> : vector<64xf32>
    %9 = vector.multi_reduction <add>, %8, %cst_5 [0] : vector<8x64xf32> to vector<64xf32>
    %10 = vector.shape_cast %9 : vector<64xf32> to vector<1x64xf32>
    %cst_6 = arith.constant 8.000000e+00 : f32
    %11 = vector.broadcast %cst_6 : f32 to vector<1x64xf32>
    %12 = arith.divf %10, %11 : vector<1x64xf32>
    %13 = vector.broadcast %12 : vector<1x64xf32> to vector<8x64xf32>
    %14 = arith.subf %8, %13 : vector<8x64xf32>
    %15 = arith.mulf %14, %14 : vector<8x64xf32>
    %cst_7 = arith.constant dense<0.000000e+00> : vector<64xf32>
    %16 = vector.multi_reduction <add>, %15, %cst_7 [0] : vector<8x64xf32> to vector<64xf32>
    %17 = vector.shape_cast %16 : vector<64xf32> to vector<1x64xf32>
    %cst_8 = arith.constant 8.000000e+00 : f32
    %18 = vector.broadcast %cst_8 : f32 to vector<1x64xf32>
    %19 = arith.divf %17, %18 : vector<1x64xf32>
    %20 = vector.broadcast %12 : vector<1x64xf32> to vector<8x64xf32>
    %21 = arith.subf %8, %20 : vector<8x64xf32>
    %cst_9 = arith.constant 9.99999974E-6 : f32
    %22 = vector.broadcast %cst_9 : f32 to vector<1x64xf32>
    %23 = arith.addf %19, %22 : vector<1x64xf32>
    %24 = math.rsqrt %23 : vector<1x64xf32>
    %25 = vector.broadcast %24 : vector<1x64xf32> to vector<8x64xf32>
    %26 = arith.mulf %21, %25 : vector<8x64xf32>
    %27 = vector.broadcast %3 : vector<1x64xf32> to vector<8x64xf32>
    %28 = arith.mulf %26, %27 : vector<8x64xf32>
    %29 = vector.broadcast %4 : vector<1x64xf32> to vector<8x64xf32>
    %30 = arith.addf %28, %29 : vector<8x64xf32>
    %cst_10 = arith.constant 0.000000e+00 : f32
    %31 = vector.broadcast %cst_10 : f32 to vector<8x64xf32>
    %32 = arith.maximumf %30, %31 : vector<8x64xf32>
    %cst_11 = arith.constant dense<0.000000e+00> : vector<8x3xf32>
    %33 = tpu.matmul %32, %6, %cst_11 {dimension_numbers = #tpu.dot_dimension_numbers<[1], [0], [0], [1], [0, 0, 1, 1], [], []>} : vector<8x64xf32>, vector<64x3xf32>, vector<8x3xf32> -> vector<8x3xf32>
    %34 = vector.broadcast %7 : vector<1x3xf32> to vector<8x3xf32>
    %35 = arith.addf %33, %34 : vector<8x3xf32>
    %36 = tpu.iota {dimensions = array<i32: 1>} : vector<8x3xi32>
    %c2_i32 = arith.constant 2 : i32
    %37 = vector.broadcast %c2_i32 : i32 to vector<8x3xi32>
    %38 = arith.cmpi slt, %36, %37 : vector<8x3xi32>
    %cst_12 = arith.constant 0xFF800000 : f32
    %39 = vector.broadcast %cst_12 : f32 to vector<8x3xf32>
    %40 = arith.select %38, %35, %39 : vector<8x3xi1>, vector<8x3xf32>
    %cst_13 = arith.constant dense<0xFF800000> : vector<8xf32>
    %41 = vector.multi_reduction <maximumf>, %40, %cst_13 [1] : vector<8x3xf32> to vector<8xf32>
    %42 = vector.shape_cast %41 : vector<8xf32> to vector<8x1xf32>
    %43 = vector.broadcast %42 : vector<8x1xf32> to vector<8x3xf32>
    %44 = arith.subf %40, %43 : vector<8x3xf32>
    %45 = math.exp %44 : vector<8x3xf32>
    %cst_14 = arith.constant dense<0.000000e+00> : vector<8xf32>
    %46 = vector.multi_reduction <add>, %45, %cst_14 [1] : vector<8x3xf32> to vector<8xf32>
    %47 = vector.shape_cast %46 : vector<8xf32> to vector<8x1xf32>
    %48 = tpu.reciprocal %47 : vector<8x1xf32> -> vector<8x1xf32>
    %49 = vector.broadcast %48 : vector<8x1xf32> to vector<8x3xf32>
    %50 = arith.mulf %45, %49 : vector<8x3xf32>
    %cst_15 = arith.constant 0.000000e+00 : f32
    %51 = vector.broadcast %cst_15 : f32 to vector<8x3xf32>
    %52 = arith.subf %51, %35 : vector<8x3xf32>
    %53 = math.exp %52 : vector<8x3xf32>
    %cst_16 = arith.constant 1.000000e+00 : f32
    %54 = vector.broadcast %cst_16 : f32 to vector<8x3xf32>
    %55 = arith.addf %54, %53 : vector<8x3xf32>
    %56 = tpu.reciprocal %55 : vector<8x3xf32> -> vector<8x3xf32>
    %cst_17 = arith.constant 1.700000e+00 : f32
    %57 = vector.broadcast %cst_17 : f32 to vector<8x3xf32>
    %58 = arith.mulf %50, %57 : vector<8x3xf32>
    %59 = arith.select %38, %58, %56 : vector<8x3xi1>, vector<8x3xf32>
    %c0_18 = arith.constant 0 : index
    %c0_19 = arith.constant 0 : index
    %60 = vector.load %arg4[%c0_18, %c0_19] : memref<8x3xf32, #tpu.memory_space<vmem>>, vector<8x3xf32>
    tpu.vector_store %arg4[%c0_18, %c0_19], %59 {strides = array<i32>} : memref<8x3xf32, #tpu.memory_space<vmem>>, vector<8x3xf32>,
    %61 = vector.extract_strided_slice %59 {offsets = [0, 1], sizes = [8, 2], strides = [1, 1]} : vector<8x3xf32> to vector<8x2xf32>
    %62 = vector.extract_strided_slice %59 {offsets = [0, 2], sizes = [8, 1], strides = [1, 1]} : vector<8x3xf32> to vector<8x1xf32>
    %63 = tpu.concatenate %61, %62 in 1 : vector<8x2xf32>, vector<8x1xf32> -> vector<8x3xf32>
    %cst_20 = arith.constant dense<0.000000e+00> : vector<8x8xf32>
    %64 = tpu.matmul %0, %63, %cst_20 {dimension_numbers = #tpu.dot_dimension_numbers<[1], [1], [0], [0], [0, 0, 1, 0], [], []>} : vector<8x3xf32>, vector<8x3xf32>, vector<8x8xf32> -> vector<8x8xf32>
    %c0_21 = arith.constant 0 : index
    %c0_22 = arith.constant 0 : index
    %65 = vector.load %arg3[%c0_21, %c0_22] : memref<8x8xf32, #tpu.memory_space<vmem>>, vector<8x8xf32>
    tpu.vector_store %arg3[%c0_21, %c0_22], %64 {strides = array<i32>} : memref<8x8xf32, #tpu.memory_space<vmem>>, vector<8x8xf32>,
    return
  }
}

</mosaic_0001>

<llo_original>
// kernel: tpu_custom_call.1
$region0: #{tpu_custom_call.1}
  #allocation0 [shape = 'u32[]', space=smem, size = 0x4, offset = 0x4, fixed_abs, tag = 'smem constant byte address 0x4 - core index']
  #allocation1 [shape = 'u32[144,128]{1,0:T(1,128)}', space=vmem, size = 0x12000, scoped, tag = 'internal scratch']
  %s0 = inlined_call_operand.vmem [shape: f32[8,3], index: 0, kind: input, shape index: {}]
  %s1 = inlined_call_operand.vmem [shape: f32[5,64], index: 1, kind: input, shape index: {}]
  %s2 = inlined_call_operand.vmem [shape: f32[65,3], index: 2, kind: input, shape index: {}]
  %s3 = inlined_call_operand.hbm [shape: f32[8,8], index: 3, kind: output, shape index: {0}]
  %s4 = inlined_call_operand.vmem [shape: f32[8,3], index: 4, kind: output, shape index: {1}]
  %5 = xla_tuple %s3, %s4
  %s6 = sld [smem:[#allocation0]]
  $region30: #{tpu_custom_call.1} parent=0
    _
  %s8 = ssub.s32 1, %s6
  %s9 = scalar_select 0, %s8, %s6
  $region1: #{tpu_custom_call.1} parent=0
    #allocation2 [shape = 'u8[4096]{0}', space=vmem, size = 0x1000, scoped, tag = 'output window, operand 0, single buffered']
    #allocation3 [shape = 's32[1]{0}', space=sflag, size = 0x4, scoped, tag = 'scoped memory for tpu_custom_call.1']
    %10 = vsyncpa [#allocation3], 0
    // Predicated region
    $region2: #{tpu_custom_call.1} parent=1 // pred_check
      _
    $region3: #{tpu_custom_call.1} parent=1 // pred_check_branch
      %12 = sbr.rel (0) target = $region5
    $region4: #{tpu_custom_call.1} parent=1 // pred_region
      _
    $region5: #{tpu_custom_call.1} parent=1 // pred_fallthru
      _
    // Predicated region
    $region6: #{tpu_custom_call.1} parent=1 // pred_check
      _
    $region7: #{tpu_custom_call.1} parent=1 // pred_check_branch
      %14 = sbr.rel (0) target = $region9
    $region8: #{tpu_custom_call.1} parent=1 // pred_region
      _
    $region9: #{tpu_custom_call.1} parent=1 // pred_fallthru
      _
    // Predicated region
    $region10: #{tpu_custom_call.1} parent=1 // pred_check
      _
    $region11: #{tpu_custom_call.1} parent=1 // pred_check_branch
      %16 = sbr.rel (0) target = $region13
    $region12: #{tpu_custom_call.1} parent=1 // pred_region
      _
    $region13: #{tpu_custom_call.1} parent=1 // pred_fallthru
      _
    %v17 = vld [vmem:[%s0] sm:$0xff]
    %v18 = vld [vmem:[%s1] sm:$0x1f]
    %v19 = vld [vmem:[%s2] sm:$0xff]
    %v20 = vld [vmem:[%s2 + $0x8] sm:$0xff]
    %v21 = vld [vmem:[%s2 + $0x10] sm:$0xff]
    %v22 = vld [vmem:[%s2 + $0x18] sm:$0xff]
    %v23 = vld [vmem:[%s2 + $0x20] sm:$0xff]
    %v24 = vld [vmem:[%s2 + $0x28] sm:$0xff]
    %v25 = vld [vmem:[%s2 + $0x30] sm:$0xff]
    %v26 = vld [vmem:[%s2 + $0x38] sm:$0xff]
    %v27 = vld [vmem:[%s2 + $0x40] sm:$0x1]
    %vm28 = vcmask 23552
    %v30 = vsel %vm28, %v17, 0
    %vm32 = vcmask 1042432
    %v34 = vsel %vm32, %v18, 0
    %36 = vmatprep.subr.mxu0 0.0
    %37 = vmatpush1.msra.mxu0 %v34
    %38 = vmatprep.subr.mxu0 0.0
    %39 = vmatpush1.msra.mxu0 0.0
    %40 = vmatprep.subr.mxu0 0.0
    %41 = vmatpush1.msra.mxu0 0.0
    %42 = vmatprep.subr.mxu0 0.0
    %43 = vmatpush1.msra.mxu0 0.0
    %44 = vmatprep.subr.mxu0 0.0
    %45 = vmatpush1.msra.mxu0 0.0
    %46 = vmatprep.subr.mxu0 0.0
    %47 = vmatpush1.msra.mxu0 0.0
    %48 = vmatprep.subr.mxu0 0.0
    %49 = vmatpush1.msra.mxu0 0.0
    %50 = vmatprep.subr.mxu0 0.0
    %51 = vmatpush1.msra.mxu0 0.0
    %52 = vmatprep.subr.mxu0 0.0
    %53 = vmatpush1.msra.mxu0 0.0
    %54 = vmatprep.subr.mxu0 0.0
    %55 = vmatpush1.msra.mxu0 0.0
    %56 = vmatprep.subr.mxu0 0.0
    %57 = vmatpush1.msra.mxu0 0.0
    %58 = vmatprep.subr.mxu0 0.0
    %59 = vmatpush1.msra.mxu0 0.0
    %60 = vmatprep.subr.mxu0 0.0
    %61 = vmatpush1.msra.mxu0 0.0
    %62 = vmatprep.subr.mxu0 0.0
    %63 = vmatpush1.msra.mxu0 0.0
    %64 = vmatprep.subr.mxu0 0.0
    %65 = vmatpush1.msra.mxu0 0.0
    %66 = vmatprep.subr.mxu0 0.0
    %67 = vmatpush1.msra.mxu0 0.0
    %68 = vmatprep.subr.mxu0 0.0
    %69 = vmatpush1.msra.mxu0 0.0
    %70 = vmatprep.subr.mxu0 0.0
    %71 = vmatpush1.msra.mxu0 0.0
    %72 = vmatprep.subr.mxu0 0.0
    %73 = vmatpush1.msra.mxu0 0.0
    %74 = vmatprep.subr.mxu0 0.0
    %75 = vmatpush1.msra.mxu0 0.0
    %76 = vmatprep.subr.mxu0 0.0
    %77 = vmatpush1.msra.mxu0 0.0
    %78 = vmatprep.subr.mxu0 0.0
    %79 = vmatpush1.msra.mxu0 0.0
    %80 = vmatprep.subr.mxu0 0.0
    %81 = vmatpush1.msra.mxu0 0.0
    %82 = vmatprep.subr.mxu0 0.0
    %83 = vmatpush1.msra.mxu0 0.0
    %84 = vmatprep.subr.mxu0 0.0
    %85 = vmatpush1.msra.mxu0 0.0
    %86 = vmatprep.subr.mxu0 0.0
    %87 = vmatpush1.msra.mxu0 0.0
    %88 = vmatprep.subr.mxu0 0.0
    %89 = vmatpush1.msra.mxu0 0.0
    %90 = vmatprep.subr.mxu0 0.0
    %91 = vmatpush1.msra.mxu0 0.0
    %92 = vmatprep.subr.mxu0 0.0
    %93 = vmatpush1.msra.mxu0 0.0
    %94 = vmatprep.subr.mxu0 0.0
    %95 = vmatpush1.msra.mxu0 0.0
    %96 = vmatprep.subr.mxu0 0.0
    %97 = vmatpush1.msra.mxu0 0.0
    %98 = vmatprep.subr.mxu0 0.0
    %99 = vmatpush1.msra.mxu0 0.0
    %100 = vmatprep.mubr.f32.mxu0 0.0
    %101 = vmatmul.mubr.f32.gmra.mrb[0].mxu0 %v30
    %v102 = vpop.f32.mrb[0].mxu0
    %v103 = vadd.f32 0.0, %v102
    %v104 = vpop.f32.mrb[0].mxu0
    %105 = vdwg.mxu0
    %vm106 = vcmask 523264
    %v107 = vsel %vm106, %v103, 0.0
    %v108 = vrot.slane %v107, 4
    %v109 = vadd.f32 %v107, %v108
    %v110 = vrot.slane %v109, 2
    %v111 = vadd.f32 %v109, %v110
    %v112 = vrot.slane %v111, 1
    %v113 = vadd.f32 %v111, %v112
    %v114 = vrcp.pop 8.0
    %v115 = vmul.f32 %v113, %v114
    %v116 = vsub.f32 %v103, %v115
    %v117 = vmul.f32 %v116, %v116
    %v118 = vsel %vm106, %v117, 0.0
    %v119 = vrot.slane %v118, 4
    %v120 = vadd.f32 %v118, %v119
    %v121 = vrot.slane %v120, 2
    %v122 = vadd.f32 %v120, %v121
    %v123 = vrot.slane %v122, 1
    %v124 = vadd.f32 %v122, %v123
    %v125 = vmul.f32 %v124, %v114
    %v126 = vadd.f32 %v125, 1e-05
    %v127 = vrsqrt.pop %v126
    %v128 = vmul.f32 %v116, %v127
    %v129 = vlaneseq
    %v130 = vshrl.u32 %v129, 7
    %v131 = vsub.s32 3, %v130
    %v132 = vrot.slane %v18, %v131
    %v133 = vmul.f32 %v128, %v132
    %v134 = vlaneseq
    %v135 = vshrl.u32 %v134, 7
    %v136 = vsub.s32 4, %v135
    %v137 = vrot.slane %v18, %v136
    %v138 = vadd.f32 %v133, %v137
    %v139 = vmax.f32 %v138, 0.0
    %v140 = vlaneseq
    %v141 = vshrl.u32 %v140, 7
    %v142 = vsub.s32 0, %v141
    %v143 = vrot.slane %v27, %v142
    %v145 = vsel %vm106, %v139, 0
    %147 = vmatprep.subr.mxu0 0.0
    %148 = vmatpush1.msra.mxu0 %v19
    %149 = vmatprep.subr.mxu0 0.0
    %150 = vmatpush1.msra.mxu0 %v20
    %151 = vmatprep.subr.mxu0 0.0
    %152 = vmatpush1.msra.mxu0 %v21
    %153 = vmatprep.subr.mxu0 0.0
    %154 = vmatpush1.msra.mxu0 %v22
    %155 = vmatprep.subr.mxu0 0.0
    %156 = vmatpush1.msra.mxu0 %v23
    %157 = vmatprep.subr.mxu0 0.0
    %158 = vmatpush1.msra.mxu0 %v24
    %159 = vmatprep.subr.mxu0 0.0
    %160 = vmatpush1.msra.mxu0 %v25
    %161 = vmatprep.subr.mxu0 0.0
    %162 = vmatpush1.msra.mxu0 %v26
    %163 = vmatprep.subr.mxu0 0.0
    %164 = vmatpush1.msra.mxu0 0.0
    %165 = vmatprep.subr.mxu0 0.0
    %166 = vmatpush1.msra.mxu0 0.0
    %167 = vmatprep.subr.mxu0 0.0
    %168 = vmatpush1.msra.mxu0 0.0
    %169 = vmatprep.subr.mxu0 0.0
    %170 = vmatpush1.msra.mxu0 0.0
    %171 = vmatprep.subr.mxu0 0.0
    %172 = vmatpush1.msra.mxu0 0.0
    %173 = vmatprep.subr.mxu0 0.0
    %174 = vmatpush1.msra.mxu0 0.0
    %175 = vmatprep.subr.mxu0 0.0
    %176 = vmatpush1.msra.mxu0 0.0
    %177 = vmatprep.subr.mxu0 0.0
    %178 = vmatpush1.msra.mxu0 0.0
    %179 = vmatprep.subr.mxu0 0.0
    %180 = vmatpush1.msra.mxu0 0.0
    %181 = vmatprep.subr.mxu0 0.0
    %182 = vmatpush1.msra.mxu0 0.0
    %183 = vmatprep.subr.mxu0 0.0
    %184 = vmatpush1.msra.mxu0 0.0
    %185 = vmatprep.subr.mxu0 0.0
    %186 = vmatpush1.msra.mxu0 0.0
    %187 = vmatprep.subr.mxu0 0.0
    %188 = vmatpush1.msra.mxu0 0.0
    %189 = vmatprep.subr.mxu0 0.0
    %190 = vmatpush1.msra.mxu0 0.0
    %191 = vmatprep.subr.mxu0 0.0
    %192 = vmatpush1.msra.mxu0 0.0
    %193 = vmatprep.subr.mxu0 0.0
    %194 = vmatpush1.msra.mxu0 0.0
    %195 = vmatprep.subr.mxu0 0.0
    %196 = vmatpush1.msra.mxu0 0.0
    %197 = vmatprep.subr.mxu0 0.0
    %198 = vmatpush1.msra.mxu0 0.0
    %199 = vmatprep.subr.mxu0 0.0
    %200 = vmatpush1.msra.mxu0 0.0
    %201 = vmatprep.subr.mxu0 0.0
    %202 = vmatpush1.msra.mxu0 0.0
    %203 = vmatprep.subr.mxu0 0.0
    %204 = vmatpush1.msra.mxu0 0.0
    %205 = vmatprep.subr.mxu0 0.0
    %206 = vmatpush1.msra.mxu0 0.0
    %207 = vmatprep.subr.mxu0 0.0
    %208 = vmatpush1.msra.mxu0 0.0
    %209 = vmatprep.subr.mxu0 0.0
    %210 = vmatpush1.msra.mxu0 0.0
    %211 = vmatprep.mubr.f32.mxu0 0.0
    %212 = vmatmul.mubr.f32.gmra.mrb[0].mxu0 %v145
    %v213 = vpop.f32.mrb[0].mxu0
    %v214 = vadd.f32 %v143, %v213
    %v215 = vpop.f32.mrb[0].mxu0
    %216 = vdwg.mxu0
    %v217 = vlaneseq
    %v218 = vand.u32 %v217, 127
    %vm219 = vcmp.lt.s32.totalorder %v218, 2
    %v220 = vsel %vm219, %v214, -inf
    %v221 = vsel %vm28, %v220, -inf
    %222 = vmax.xlane.f32.xlu0 %v221
    %v223 = vpop.xlane.xlu0 %222
    %v224 = vsub.f32 %v220, %v223
    %v225 = vmul.f32 %v224, 1.442695
    %v226 = vpow.pop %v225
    %v227 = vsel %vm28, %v226, 0.0
    %228 = vadd.xlane.f32.xlu0 %v227
    %v229 = vpop.xlane.xlu0 %228
    %v230 = vrcp.pop %v229
    %v231 = vmul.f32 %v226, %v230
    %v232 = vsub.f32 0.0, %v214
    %v233 = vmul.f32 %v232, 1.442695
    %v234 = vpow.pop %v233
    %v235 = vadd.f32 %v234, 1.0
    %v236 = vrcp.pop %v235
    %v237 = vmul.f32 %v231, 1.7
    %v238 = vsel %vm219, %v237, %v236
    %239 = vst.msk [vmem:[%s4] sm:$0xff] %vm28, %v238
    %241 = vrot.lane.b32.xlu0 %v238, 127
    %v242 = vpop.permute.xlu0 %241
    %vm244 = vcmask 15360
    %v245 = vsel %vm244, %v242, %v238
    %v247 = vsel %vm28, %v245, 0
    %249 = vmatprep.subr.mxu0 0.0
    %250 = vmatpush1.xpose.msra.mxu0 %v247
    %251 = vmatprep.subr.mxu0 0.0
    %252 = vmatpush1.xpose.msra.mxu0 0.0
    %253 = vmatprep.subr.mxu0 0.0
    %254 = vmatpush1.xpose.msra.mxu0 0.0
    %255 = vmatprep.subr.mxu0 0.0
    %256 = vmatpush1.xpose.msra.mxu0 0.0
    %257 = vmatprep.subr.mxu0 0.0
    %258 = vmatpush1.xpose.msra.mxu0 0.0
    %259 = vmatprep.subr.mxu0 0.0
    %260 = vmatpush1.xpose.msra.mxu0 0.0
    %261 = vmatprep.subr.mxu0 0.0
    %262 = vmatpush1.xpose.msra.mxu0 0.0
    %263 = vmatprep.subr.mxu0 0.0
    %264 = vmatpush1.xpose.msra.mxu0 0.0
    %265 = vmatprep.subr.mxu0 0.0
    %266 = vmatpush1.xpose.msra.mxu0 0.0
    %267 = vmatprep.subr.mxu0 0.0
    %268 = vmatpush1.xpose.msra.mxu0 0.0
    %269 = vmatprep.subr.mxu0 0.0
    %270 = vmatpush1.xpose.msra.mxu0 0.0
    %271 = vmatprep.subr.mxu0 0.0
    %272 = vmatpush1.xpose.msra.mxu0 0.0
    %273 = vmatprep.subr.mxu0 0.0
    %274 = vmatpush1.xpose.msra.mxu0 0.0
    %275 = vmatprep.subr.mxu0 0.0
    %276 = vmatpush1.xpose.msra.mxu0 0.0
    %277 = vmatprep.subr.mxu0 0.0
    %278 = vmatpush1.xpose.msra.mxu0 0.0
    %279 = vmatprep.subr.mxu0 0.0
    %280 = vmatpush1.xpose.msra.mxu0 0.0
    %281 = vmatprep.subr.mxu0 0.0
    %282 = vmatpush1.xpose.msra.mxu0 0.0
    %283 = vmatprep.subr.mxu0 0.0
    %284 = vmatpush1.xpose.msra.mxu0 0.0
    %285 = vmatprep.subr.mxu0 0.0
    %286 = vmatpush1.xpose.msra.mxu0 0.0
    %287 = vmatprep.subr.mxu0 0.0
    %288 = vmatpush1.xpose.msra.mxu0 0.0
    %289 = vmatprep.subr.mxu0 0.0
    %290 = vmatpush1.xpose.msra.mxu0 0.0
    %291 = vmatprep.subr.mxu0 0.0
    %292 = vmatpush1.xpose.msra.mxu0 0.0
    %293 = vmatprep.subr.mxu0 0.0
    %294 = vmatpush1.xpose.msra.mxu0 0.0
    %295 = vmatprep.subr.mxu0 0.0
    %296 = vmatpush1.xpose.msra.mxu0 0.0
    %297 = vmatprep.subr.mxu0 0.0
    %298 = vmatpush1.xpose.msra.mxu0 0.0
    %299 = vmatprep.subr.mxu0 0.0
    %300 = vmatpush1.xpose.msra.mxu0 0.0
    %301 = vmatprep.subr.mxu0 0.0
    %302 = vmatpush1.xpose.msra.mxu0 0.0
    %303 = vmatprep.subr.mxu0 0.0
    %304 = vmatpush1.xpose.msra.mxu0 0.0
    %305 = vmatprep.subr.mxu0 0.0
    %306 = vmatpush1.xpose.msra.mxu0 0.0
    %307 = vmatprep.subr.mxu0 0.0
    %308 = vmatpush1.xpose.msra.mxu0 0.0
    %309 = vmatprep.subr.mxu0 0.0
    %310 = vmatpush1.xpose.msra.mxu0 0.0
    %311 = vmatprep.subr.mxu0 0.0
    %312 = vmatpush1.xpose.msra.mxu0 0.0
    %313 = vmatprep.mubr.f32.mxu0 0.0
    %314 = vmatmul.mubr.f32.gmra.mrb[0].mxu0 %v30
    %v315 = vpop.f32.mrb[0].mxu0
    %v316 = vadd.f32 0.0, %v315
    %v317 = vpop.f32.mrb[0].mxu0
    %318 = vdwg.mxu0
    %vm319 = vcmask 64512
    %320 = vst.msk [vmem:[#allocation2] sm:$0xff] %vm319, %v316
    // Predicated region
    $region14: #{tpu_custom_call.1} parent=1 // pred_check
      _
    $region15: #{tpu_custom_call.1} parent=1 // pred_check_branch
      %322 = sbr.rel (0) target = $region17
    $region16: #{tpu_custom_call.1} parent=1 // pred_region
      %s324 = ssub.s32 128, 128
      %325 = vsyncadd [#allocation3], %s324
      %s327 = sshll.u32 [#allocation2], 4
      %s328 = int_to_ptr.vmem [resolvable:$true] %s327
      %330 = dma.vmem_to_hbm [thread:$0]  %s328, 128, %s3, [#allocation3]
    $region17: #{tpu_custom_call.1} parent=1 // pred_fallthru
      _
    // Predicated region
    $region18: #{tpu_custom_call.1} parent=1 // pred_check
      _
    $region19: #{tpu_custom_call.1} parent=1 // pred_check_branch
      %332 = sbr.rel (0) target = $region21
    $region20: #{tpu_custom_call.1} parent=1 // pred_region
      _
    $region21: #{tpu_custom_call.1} parent=1 // pred_fallthru
      _
    // Predicated region
    $region22: #{tpu_custom_call.1} parent=1 // pred_check
      _
    $region23: #{tpu_custom_call.1} parent=1 // pred_check_branch
      %334 = sbr.rel (0) target = $region25
    $region24: #{tpu_custom_call.1} parent=1 // pred_region
      %335 = dma.done [#allocation3], 128
    $region25: #{tpu_custom_call.1} parent=1 // pred_fallthru
      _
    // Predicated region
    $region26: #{tpu_custom_call.1} parent=1 // pred_check
      _
    $region27: #{tpu_custom_call.1} parent=1 // pred_check_branch
      %337 = sbr.rel (0) target = $region29
    $region28: #{tpu_custom_call.1} parent=1 // pred_region
      _
    $region29: #{tpu_custom_call.1} parent=1 // pred_fallthru
      _
    %338 = vsyncpa [#allocation3], 1

</llo_original>
